<compile_context>
chip_gen: v7x
topology: tpu7x:2x2x1
jax: 0.10.0
libtpu: 0.0.40
codegen_flags: <defaults>
</compile_context>

<pallas_src>
import jax
import jax.numpy as jnp
from jax.experimental import pallas as pl
from jax.experimental.pallas import tpu as pltpu

_LANE = 128
_SUBLANE = 8


def _nse_partial_kernel(shift_ref, real_ref, pred_ref, acc_ref):
    """Accumulate shifted sufficient statistics for one (block_rows, 128) tile.

    shift_ref : SMEM (1,) f32        -- shift c (first element of `real`)
    real_ref  : VMEM (block_rows, 128)
    pred_ref  : VMEM (block_rows, 128)
    acc_ref   : VMEM (1, 3, 8, 128) f32 output block, resident across the
                inner (reduction) grid axis:
                  acc[0,0] = per-lane partial sums of (real - c)
                  acc[0,1] = per-lane partial sums of (real - c)^2
                  acc[0,2] = per-lane partial sums of (pred - real)^2
    """
    k = pl.program_id(1)

    @pl.when(k == 0)
    def _():
        acc_ref[...] = jnp.zeros_like(acc_ref)

    c = shift_ref[0]
    real = real_ref[...].astype(jnp.float32)
    pred = pred_ref[...].astype(jnp.float32)

    rs = real - c          # shifted real
    diff = pred - real     # residual

    def fold(x):
        # (block_rows, 128) -> (8, 128): pure VPU vreg adds over the leading
        # axis (no cross-lane / XLU work in the steady-state loop).
        return jnp.sum(x.reshape(-1, _SUBLANE, _LANE), axis=0)

    acc_ref[0, 0] += fold(rs)
    acc_ref[0, 1] += fold(rs * rs)
    acc_ref[0, 2] += fold(diff * diff)


def nse_loss(real, pred, *, max_block_rows=512):
    """Pallas TPU implementation of NSELoss.forward(real, pred) -> scalar."""
    assert real.shape == pred.shape, "real and pred must have the same shape"
    n = int(real.size)
    assert n > 0, "NSELoss requires a non-empty input"

    real_flat = jnp.ravel(real)
    pred_flat = jnp.ravel(pred)

    # Cheap shift for numerical stability of the single-pass variance.
    shift = real_flat[0].astype(jnp.float32)

    rows128 = n // _LANE
    # Block rows: as large as sensible (512*128*4B = 256 KiB per input per
    # pipeline buffer -> ~1 MiB steady-state VMEM), clamped for tiny inputs.
    block_rows = min(max_block_rows, (rows128 // _SUBLANE) * _SUBLANE)

    s1 = jnp.float32(0.0)
    s2 = jnp.float32(0.0)
    se = jnp.float32(0.0)
    bulk = 0

    if block_rows >= _SUBLANE:
        num_blocks = rows128 // block_rows
        # Leading "parallel" axis: lets v7x shard the reduction over both
        # TensorCores; harmless sequential loop on single-TC chips.
        p_dim = 2 if (num_blocks >= 2 and num_blocks % 2 == 0) else 1
        num_k = num_blocks // p_dim
        bulk_rows = num_blocks * block_rows
        bulk = bulk_rows * _LANE

        real2d = real_flat[:bulk].reshape(bulk_rows, _LANE)
        pred2d = pred_flat[:bulk].reshape(bulk_rows, _LANE)
        shift_arr = jnp.reshape(shift, (1,))

        parts = pl.pallas_call(
            _nse_partial_kernel,
            out_shape=jax.ShapeDtypeStruct((p_dim, 3, _SUBLANE, _LANE), jnp.float32),
            grid=(p_dim, num_k),
            in_specs=[
                pl.BlockSpec(memory_space=pltpu.SMEM),  # shift scalar
                pl.BlockSpec((block_rows, _LANE), lambda p, k: (p * num_k + k, 0)),
                pl.BlockSpec((block_rows, _LANE), lambda p, k: (p * num_k + k, 0)),
            ],
            out_specs=pl.BlockSpec(
                (1, 3, _SUBLANE, _LANE), lambda p, k: (p, 0, 0, 0)
            ),
            compiler_params=pltpu.CompilerParams(
                dimension_semantics=("parallel", "arbitrary"),
                vmem_limit_bytes=32 * 1024 * 1024,
            ),
        )(shift_arr, real2d, pred2d)

        sums = jnp.sum(parts, axis=(0, 2, 3))  # (3,) cross-lane collapse, once
        s1, s2, se = sums[0], sums[1], sums[2]

    # Tail fixup for the (< one block) remainder that the tiled grid skipped.
    # TODO(synk): for huge non-block-divisible inputs the prefix slice above
    # may materialize a copy; could be folded into a masked last block instead.
    if bulk < n:
        rt = real_flat[bulk:].astype(jnp.float32)
        pt = pred_flat[bulk:].astype(jnp.float32)
        rts = rt - shift
        dt = pt - rt
        s1 = s1 + jnp.sum(rts)
        s2 = s2 + jnp.sum(rts * rts)
        se = se + jnp.sum(dt * dt)

    denom = s2 - (s1 * s1) / jnp.float32(n)
    return se / denom  # denom == 0 -> inf/NaN, same as the PyTorch module


if __name__ == "__main__":
    key = jax.random.PRNGKey(0)
    k1, k2, k3, k4 = jax.random.split(key, 4)

    def ref_nse(r, p):
        r = r.astype(jnp.float32)
        p = p.astype(jnp.float32)
        return jnp.sum((p - r) ** 2) / jnp.sum((r - jnp.mean(r)) ** 2)

    # Small NCHW example: batch=2, channels=4, spatial=16x16.
    real = jax.random.normal(k1, (2, 4, 16, 16), dtype=jnp.float32)
    pred = real + 0.1 * jax.random.normal(k2, (2, 4, 16, 16), dtype=jnp.float32)
    loss = nse_loss(real, pred)
    jax.block_until_ready(loss)
    assert jnp.allclose(loss, ref_nse(real, pred), rtol=1e-5, atol=1e-6), (
        loss, ref_nse(real, pred))

    # Larger input exercising the multi-block grid + parallel leading axis.
    real_b = jax.random.normal(k3, (8, 8, 64, 64), dtype=jnp.float32) + 3.0
    pred_b = real_b + 0.05 * jax.random.normal(k4, (8, 8, 64, 64), dtype=jnp.float32)
    loss_b = nse_loss(real_b, pred_b)
    jax.block_until_ready(loss_b)
    assert jnp.allclose(loss_b, ref_nse(real_b, pred_b), rtol=1e-4, atol=1e-5), (
        loss_b, ref_nse(real_b, pred_b))

    # Awkward (non-128-divisible) shape exercising the wrapper tail fixup.
    real_c = jax.random.normal(k3, (3, 5, 17, 19), dtype=jnp.float32)
    pred_c = real_c + 0.1 * jax.random.normal(k4, (3, 5, 17, 19), dtype=jnp.float32)
    loss_c = nse_loss(real_c, pred_c)
    jax.block_until_ready(loss_c)
    assert jnp.allclose(loss_c, ref_nse(real_c, pred_c), rtol=1e-4, atol=1e-5), (
        loss_c, ref_nse(real_c, pred_c))

    print("KERNEL_OK")
</pallas_src>

<mosaic_0001>
module attributes {stable_mosaic.version = 11 : i64} {
  func.func @_nse_partial_kernel(%arg0: i32, %arg1: i32, %arg2: memref<1xf32, #tpu.memory_space<smem>>, %arg3: memref<16x128xf32, #tpu.memory_space<vmem>>, %arg4: memref<16x128xf32, #tpu.memory_space<vmem>>, %arg5: memref<1x3x8x128xf32, #tpu.memory_space<vmem>>) attributes {dimension_semantics = [#tpu.dimension_semantics<parallel>, #tpu.dimension_semantics<arbitrary>], iteration_bounds = array<i64: 1, 1>, scalar_prefetch = 0 : i64, scratch_operands = 0 : i64, tpu.core_type = #tpu.core_type<tc>, window_params = [{transform_indices = @transform_0, window_bounds = array<i64: 1>}, {transform_indices = @transform_1, window_bounds = array<i64: 16, 128>}, {transform_indices = @transform_2, window_bounds = array<i64: 16, 128>}, {transform_indices = @transform_3, window_bounds = array<i64: 1, 3, 8, 128>}]} {
    %c0_i32 = arith.constant 0 : i32
    %0 = arith.cmpi eq, %arg1, %c0_i32 : i32
    %1 = arith.extui %0 : i1 to i32
    %c0_i32_0 = arith.constant 0 : i32
    %2 = arith.cmpi ne, %1, %c0_i32_0 : i32
    scf.if %2 {
      %cst_29 = arith.constant 0.000000e+00 : f32
      %35 = vector.broadcast %cst_29 : f32 to vector<1x3x8x128xf32>
      %c0_30 = arith.constant 0 : index
      %c0_31 = arith.constant 0 : index
      %c0_32 = arith.constant 0 : index
      %c0_33 = arith.constant 0 : index
      %36 = vector.load %arg5[%c0_30, %c0_31, %c0_32, %c0_33] : memref<1x3x8x128xf32, #tpu.memory_space<vmem>>, vector<1x3x8x128xf32>
      tpu.vector_store %arg5[%c0_30, %c0_31, %c0_32, %c0_33], %35 {strides = array<i32>} : memref<1x3x8x128xf32, #tpu.memory_space<vmem>>, vector<1x3x8x128xf32>,
    } else {
    }
    %c0 = arith.constant 0 : index
    %3 = memref.load %arg2[%c0] : memref<1xf32, #tpu.memory_space<smem>>
    %c0_1 = arith.constant 0 : index
    %c0_2 = arith.constant 0 : index
    %4 = vector.load %arg3[%c0_1, %c0_2] : memref<16x128xf32, #tpu.memory_space<vmem>>, vector<16x128xf32>
    %c0_3 = arith.constant 0 : index
    %c0_4 = arith.constant 0 : index
    %5 = vector.load %arg4[%c0_3, %c0_4] : memref<16x128xf32, #tpu.memory_space<vmem>>, vector<16x128xf32>
    %6 = vector.broadcast %3 : f32 to vector<16x128xf32>
    %7 = arith.subf %4, %6 : vector<16x128xf32>
    %8 = arith.subf %5, %4 : vector<16x128xf32>
    %c0_5 = arith.constant 0 : index
    %c0_6 = arith.constant 0 : index
    %c0_7 = arith.constant 0 : index
    %c0_8 = arith.constant 0 : index
    %9 = vector.load %arg5[%c0_5, %c0_6, %c0_7, %c0_8] : memref<1x3x8x128xf32, #tpu.memory_space<vmem>>, vector<1x1x8x128xf32>
    %10 = vector.shape_cast %9 : vector<1x1x8x128xf32> to vector<8x128xf32>
    %11 = vector.shape_cast %7 : vector<16x128xf32> to vector<2x8x128xf32>
    %cst = arith.constant dense<0.000000e+00> : vector<8x128xf32>
    %12 = vector.multi_reduction <add>, %11, %cst [0] : vector<2x8x128xf32> to vector<8x128xf32>
    %13 = arith.addf %10, %12 : vector<8x128xf32>
    %c0_9 = arith.constant 0 : index
    %c0_10 = arith.constant 0 : index
    %c0_11 = arith.constant 0 : index
    %c0_12 = arith.constant 0 : index
    %14 = vector.load %arg5[%c0_9, %c0_10, %c0_11, %c0_12] : memref<1x3x8x128xf32, #tpu.memory_space<vmem>>, vector<1x1x8x128xf32>
    %15 = vector.shape_cast %14 : vector<1x1x8x128xf32> to vector<8x128xf32>
    %16 = vector.shape_cast %13 : vector<8x128xf32> to vector<1x1x8x128xf32>
    tpu.vector_store %arg5[%c0_9, %c0_10, %c0_11, %c0_12], %16 {strides = array<i32>} : memref<1x3x8x128xf32, #tpu.memory_space<vmem>>, vector<1x1x8x128xf32>,
    %c0_13 = arith.constant 0 : index
    %c1 = arith.constant 1 : index
    %c0_14 = arith.constant 0 : index
    %c0_15 = arith.constant 0 : index
    %17 = vector.load %arg5[%c0_13, %c1, %c0_14, %c0_15] : memref<1x3x8x128xf32, #tpu.memory_space<vmem>>, vector<1x1x8x128xf32>
    %18 = vector.shape_cast %17 : vector<1x1x8x128xf32> to vector<8x128xf32>
    %19 = arith.mulf %7, %7 : vector<16x128xf32>
    %20 = vector.shape_cast %19 : vector<16x128xf32> to vector<2x8x128xf32>
    %cst_16 = arith.constant dense<0.000000e+00> : vector<8x128xf32>
    %21 = vector.multi_reduction <add>, %20, %cst_16 [0] : vector<2x8x128xf32> to vector<8x128xf32>
    %22 = arith.addf %18, %21 : vector<8x128xf32>
    %c0_17 = arith.constant 0 : index
    %c1_18 = arith.constant 1 : index
    %c0_19 = arith.constant 0 : index
    %c0_20 = arith.constant 0 : index
    %23 = vector.load %arg5[%c0_17, %c1_18, %c0_19, %c0_20] : memref<1x3x8x128xf32, #tpu.memory_space<vmem>>, vector<1x1x8x128xf32>
    %24 = vector.shape_cast %23 : vector<1x1x8x128xf32> to vector<8x128xf32>
    %25 = vector.shape_cast %22 : vector<8x128xf32> to vector<1x1x8x128xf32>
    tpu.vector_store %arg5[%c0_17, %c1_18, %c0_19, %c0_20], %25 {strides = array<i32>} : memref<1x3x8x128xf32, #tpu.memory_space<vmem>>, vector<1x1x8x128xf32>,
    %c0_21 = arith.constant 0 : index
    %c2 = arith.constant 2 : index
    %c0_22 = arith.constant 0 : index
    %c0_23 = arith.constant 0 : index
    %26 = vector.load %arg5[%c0_21, %c2, %c0_22, %c0_23] : memref<1x3x8x128xf32, #tpu.memory_space<vmem>>, vector<1x1x8x128xf32>
    %27 = vector.shape_cast %26 : vector<1x1x8x128xf32> to vector<8x128xf32>
    %28 = arith.mulf %8, %8 : vector<16x128xf32>
    %29 = vector.shape_cast %28 : vector<16x128xf32> to vector<2x8x128xf32>
    %cst_24 = arith.constant dense<0.000000e+00> : vector<8x128xf32>
    %30 = vector.multi_reduction <add>, %29, %cst_24 [0] : vector<2x8x128xf32> to vector<8x128xf32>
    %31 = arith.addf %27, %30 : vector<8x128xf32>
    %c0_25 = arith.constant 0 : index
    %c2_26 = arith.constant 2 : index
    %c0_27 = arith.constant 0 : index
    %c0_28 = arith.constant 0 : index
    %32 = vector.load %arg5[%c0_25, %c2_26, %c0_27, %c0_28] : memref<1x3x8x128xf32, #tpu.memory_space<vmem>>, vector<1x1x8x128xf32>
    %33 = vector.shape_cast %32 : vector<1x1x8x128xf32> to vector<8x128xf32>
    %34 = vector.shape_cast %31 : vector<8x128xf32> to vector<1x1x8x128xf32>
    tpu.vector_store %arg5[%c0_25, %c2_26, %c0_27, %c0_28], %34 {strides = array<i32>} : memref<1x3x8x128xf32, #tpu.memory_space<vmem>>, vector<1x1x8x128xf32>,
    return
  }
  func.func @transform_0(%arg0: i32, %arg1: i32) -> i32 {
    %c0_i32 = arith.constant 0 : i32
    %c0_i32_0 = arith.constant 0 : i32
    return %c0_i32 : i32
  }
  func.func @transform_1(%arg0: i32, %arg1: i32) -> (i32, i32) {
    %c1_i32 = arith.constant 1 : i32
    %0 = arith.muli %arg0, %c1_i32 : i32
    %1 = arith.addi %0, %arg1 : i32
    %c0_i32 = arith.constant 0 : i32
    %c0_i32_0 = arith.constant 0 : i32
    return %1, %c0_i32 : i32, i32
  }
  func.func @transform_2(%arg0: i32, %arg1: i32) -> (i32, i32) {
    %c1_i32 = arith.constant 1 : i32
    %0 = arith.muli %arg0, %c1_i32 : i32
    %1 = arith.addi %0, %arg1 : i32
    %c0_i32 = arith.constant 0 : i32
    %c0_i32_0 = arith.constant 0 : i32
    return %1, %c0_i32 : i32, i32
  }
  func.func @transform_3(%arg0: i32, %arg1: i32) -> (i32, i32, i32, i32) {
    %c0_i32 = arith.constant 0 : i32
    %c0_i32_0 = arith.constant 0 : i32
    %c0_i32_1 = arith.constant 0 : i32
    %c0_i32_2 = arith.constant 0 : i32
    return %arg0, %c0_i32, %c0_i32_0, %c0_i32_1 : i32, i32, i32, i32
  }
}

</mosaic_0001>

<llo_original>
// kernel: tpu_custom_call.1
$region0: #{tpu_custom_call.1}
  #allocation0 [shape = 'u32[]', space=smem, size = 0x4, offset = 0x4, fixed_abs, tag = 'smem constant byte address 0x4 - core index']
  #allocation1 [shape = 'u32[144,128]{1,0:T(1,128)}', space=vmem, size = 0x12000, scoped, tag = 'internal scratch']
  #allocation2 [shape = 'f32[1]{0:T(128)S(6)}', space=smem, size = 0x200, scoped, tag = 'scoped memory for tpu_custom_call.1']
  %s0 = inlined_call_operand.<no memory space> [shape: f32[1], index: 0, kind: input, shape index: {}]
  %s1 = inlined_call_operand.hbm [shape: f32[16,128], index: 1, kind: input, shape index: {}]
  %s2 = inlined_call_operand.hbm [shape: f32[16,128], index: 2, kind: input, shape index: {}]
  %s3 = inlined_call_operand.hbm [shape: f32[1,3,8,128], index: 3, kind: output, shape index: {}]
  %s4 = sld [smem:[#allocation0]]
  $region34: #{tpu_custom_call.1} parent=0
    _
  %s6 = ssub.s32 1, %s4
  %s7 = scalar_select 0, %s6, %s4
  %8 = sst [smem:[#allocation2]] %s0
  $region1: #{tpu_custom_call.1} parent=0
    #allocation3 [shape = 'u8[8192]{0}', space=vmem, size = 0x2000, scoped, tag = 'input window, operand 1, single buffered']
    #allocation4 [shape = 's32[1]{0}', space=sflag, size = 0x4, scoped, tag = 'scoped memory for tpu_custom_call.1']
    #allocation5 [shape = 's32[1]{0}', space=sflag, size = 0x4, scoped, tag = 'scoped memory for tpu_custom_call.1']
    #allocation6 [shape = 'u8[8192]{0}', space=vmem, size = 0x2000, scoped, tag = 'input window, operand 2, single buffered']
    #allocation7 [shape = 's32[1]{0}', space=sflag, size = 0x4, scoped, tag = 'scoped memory for tpu_custom_call.1']
    #allocation8 [shape = 'u8[12288]{0}', space=vmem, size = 0x3000, scoped, tag = 'output window, operand 0, single buffered']
    %9 = vsyncpa [#allocation4], 0
    %10 = vsyncpa [#allocation7], 0
    %11 = vsyncpa [#allocation5], 0
    // Predicated region
    $region2: #{tpu_custom_call.1} parent=1 // pred_check
      _
    $region3: #{tpu_custom_call.1} parent=1 // pred_check_branch
      %13 = sbr.rel (0) target = $region5
    $region4: #{tpu_custom_call.1} parent=1 // pred_region
      _
    $region5: #{tpu_custom_call.1} parent=1 // pred_fallthru
      _
    // Predicated region
    $region6: #{tpu_custom_call.1} parent=1 // pred_check
      _
    $region7: #{tpu_custom_call.1} parent=1 // pred_check_branch
      %15 = sbr.rel (0) target = $region9
    $region8: #{tpu_custom_call.1} parent=1 // pred_region
      %s16 = sadd.s32 0, 0
      %s17 = smul.u32 2, %s16
      %s19 = ssub.s32 256, 256
      %20 = vsyncadd [#allocation4], %s19
      %s21 = smul.addr %s17, 128
      %s22 = scalar_lea.hbm %s1, %s21
      %s23 = sshll.u32 [#allocation3], 4
      %s24 = int_to_ptr.vmem [resolvable:$true] %s23
      %29 = dma.hbm_to_vmem [thread:$0]  %s22, 256, %s24, [#allocation4], 128, 128, 8
    $region9: #{tpu_custom_call.1} parent=1 // pred_fallthru
      _
    // Predicated region
    $region10: #{tpu_custom_call.1} parent=1 // pred_check
      _
    $region11: #{tpu_custom_call.1} parent=1 // pred_check_branch
      %31 = sbr.rel (0) target = $region13
    $region12: #{tpu_custom_call.1} parent=1 // pred_region
      %s32 = sadd.s32 0, 0
      %s33 = smul.u32 2, %s32
      %s35 = ssub.s32 256, 256
      %36 = vsyncadd [#allocation7], %s35
      %s37 = smul.addr %s33, 128
      %s38 = scalar_lea.hbm %s2, %s37
      %s39 = sshll.u32 [#allocation6], 4
      %s40 = int_to_ptr.vmem [resolvable:$true] %s39
      %45 = dma.hbm_to_vmem [thread:$0]  %s38, 256, %s40, [#allocation7], 128, 128, 8
    $region13: #{tpu_custom_call.1} parent=1 // pred_fallthru
      _
    // Predicated region
    $region14: #{tpu_custom_call.1} parent=1 // pred_check
      _
    $region15: #{tpu_custom_call.1} parent=1 // pred_check_branch
      %47 = sbr.rel (0) target = $region17
    $region16: #{tpu_custom_call.1} parent=1 // pred_region
      %48 = dma.done [#allocation4], 256
    $region17: #{tpu_custom_call.1} parent=1 // pred_fallthru
      _
    // Predicated region
    $region18: #{tpu_custom_call.1} parent=1 // pred_check
      _
    $region19: #{tpu_custom_call.1} parent=1 // pred_check_branch
      %50 = sbr.rel (0) target = $region21
    $region20: #{tpu_custom_call.1} parent=1 // pred_region
      %51 = dma.done [#allocation7], 256
    $region21: #{tpu_custom_call.1} parent=1 // pred_fallthru
      _
    %s52 = sadd.s32 0, 0
    %s53 = smul.u32 2, %s52
    %s54 = sadd.s32 0, 0
    %s55 = smul.u32 2, %s54
    %p56 = scmp.eq.s32.totalorder 0, 0
    // Predicated region
    $region22: #{tpu_custom_call.1} parent=1 // pred_check
      %p57 = pneg %p56
    $region23: #{tpu_custom_call.1} parent=1 // pred_check_branch
      %59 = sbr.rel (%p57) target = $region25
    $region24: #{tpu_custom_call.1} parent=1 // pred_region
      %60 = vst [vmem:[#allocation8] sm:$0xff] 0.0
      %61 = vst [vmem:[#allocation8 + $0x8] sm:$0xff] 0.0
      %62 = vst [vmem:[#allocation8 + $0x10] sm:$0xff] 0.0
    $region25: #{tpu_custom_call.1} parent=1 // pred_fallthru
      _
    %s63 = sld [smem:[#allocation2]]
    %v64 = vld [vmem:[#allocation3] sm:$0xff]
    %v65 = vld [vmem:[#allocation3 + $0x8] sm:$0xff]
    %v66 = vld [vmem:[#allocation6] sm:$0xff]
    %v67 = vld [vmem:[#allocation6 + $0x8] sm:$0xff]
    %v68 = vstv %s63
    %v69 = vsub.f32 %v64, %v68
    %v70 = vsub.f32 %v65, %v68
    %v71 = vsub.f32 %v66, %v64
    %v72 = vsub.f32 %v67, %v65
    %v73 = vld [vmem:[#allocation8] sm:$0xff]
    %v74 = vadd.f32 %v69, %v70
    %v75 = vadd.f32 %v73, %v74
    %76 = vst [vmem:[#allocation8] sm:$0xff] %v75
    %s77 = scalar_lea.vmem [#allocation8], 8
    %v78 = vld [vmem:[%s77] sm:$0xff]
    %v79 = vmul.f32 %v69, %v69
    %v80 = vmul.f32 %v70, %v70
    %v81 = vadd.f32 %v79, %v80
    %v82 = vadd.f32 %v78, %v81
    %83 = vst [vmem:[%s77] sm:$0xff] %v82
    %s84 = scalar_lea.vmem [#allocation8], 16
    %v85 = vld [vmem:[%s84] sm:$0xff]
    %v86 = vmul.f32 %v71, %v71
    %v87 = vmul.f32 %v72, %v72
    %v88 = vadd.f32 %v86, %v87
    %v89 = vadd.f32 %v85, %v88
    %90 = vst [vmem:[%s84] sm:$0xff] %v89
    // Predicated region
    $region26: #{tpu_custom_call.1} parent=1 // pred_check
      _
    $region27: #{tpu_custom_call.1} parent=1 // pred_check_branch
      %92 = sbr.rel (0) target = $region29
    $region28: #{tpu_custom_call.1} parent=1 // pred_region
      %s94 = ssub.s32 384, 384
      %95 = vsyncadd [#allocation5], %s94
      %s96 = sshll.u32 [#allocation8], 4
      %s97 = int_to_ptr.vmem [resolvable:$true] %s96
      %102 = dma.vmem_to_hbm [thread:$0]  %s97, 384, %s3, [#allocation5], 128, 128, 8
    $region29: #{tpu_custom_call.1} parent=1 // pred_fallthru
      _
    // Predicated region
    $region30: #{tpu_custom_call.1} parent=1 // pred_check
      _
    $region31: #{tpu_custom_call.1} parent=1 // pred_check_branch
      %104 = sbr.rel (0) target = $region33
    $region32: #{tpu_custom_call.1} parent=1 // pred_region
      %105 = dma.done [#allocation5], 384
    $region33: #{tpu_custom_call.1} parent=1 // pred_fallthru
      _
    %106 = vsyncpa [#allocation4], 1
    %107 = vsyncpa [#allocation7], 1
    %108 = vsyncpa [#allocation5], 1

</llo_original>
